<compile_context>
chip_gen: v7x
topology: tpu7x:2x2x1
jax: 0.10.0
libtpu: 0.0.40
codegen_flags: <defaults>
</compile_context>

<pallas_src>
import jax
import jax.numpy as jnp
from jax import lax
from jax.experimental import pallas as pl
from jax.experimental.pallas import tpu as pltpu


# ----------------------------- config (small) --------------------------------
BATCH = 32            # small demo batch (multiple of 8 sublanes); wrapper takes any B
INPUT_DIM = 64        # scaled-down config.input_dim (768)
HIDDEN_DIM = 64       # scaled-down config.hidden_dim (512)
OUTPUT_DIM = 32       # scaled-down config.output_dim (256), divisible by 8 heads
NUM_SAFETY = 5        # config.num_safety_categories
NUM_QUALITY = 3       # config.num_quality_dimensions
LN_EPS = 1e-5

LANES = 128           # lane-dense width used for all weight columns / outputs
NEG_BIG = -1e30       # finite "-inf" for masked softmax

# output-slab lane layout: [0]=perf, [1:6]=safety, [6:9]=quality, [64:96]=hidden
NORM_OFF = 64

# row offsets of the four matmul weights inside the packed (448, 128) weight slab
W1_OFF = 0                      # (INPUT_DIM, 128)
W2_OFF = W1_OFF + INPUT_DIM     # (128, 128)
WF_OFF = W2_OFF + LANES         # (128, 128)
WH_OFF = WF_OFF + LANES         # (128, 128)
W_ROWS = WH_OFF + LANES         # 448


# ------------------------------- kernel --------------------------------------
def _seal_kernel(x_ref, w_ref, b_ref, out_ref):
    B = x_ref.shape[0]

    # ---- unpack bias / affine slab (static slices of one (8,128) f32 tile) ----
    bias = b_ref[...]
    b1, b2, bf = bias[0:1, :], bias[1:2, :], bias[2:3, :]
    ln_g, ln_b = bias[3:4, :], bias[4:5, :]      # zero-padded beyond OUTPUT_DIM
    bh = bias[5:6, :]

    # ---- unpack bf16 weight slab (static, 16-aligned sublane slices) ----------
    w1 = w_ref[W1_OFF:W1_OFF + INPUT_DIM, :]
    w2 = w_ref[W2_OFF:W2_OFF + LANES, :]
    wf = w_ref[WF_OFF:WF_OFF + LANES, :]
    wh = w_ref[WH_OFF:WH_OFF + LANES, :]

    # ---- improvement_layers: Linear->ReLU->Linear->ReLU (dropout = identity) --
    x = x_ref[...].astype(jnp.bfloat16)
    h = jnp.dot(x, w1, preferred_element_type=jnp.float32) + b1
    h = jnp.maximum(h, 0.0)
    h = jnp.dot(h.astype(jnp.bfloat16), w2, preferred_element_type=jnp.float32) + b2
    h = jnp.maximum(h, 0.0)

    # Folded: third improvement Linear + MHA v_proj + out_proj (seq_len==1 attention
    # reduces exactly to out_proj(v_proj(.))), composed into one matmul.
    att = jnp.dot(h.astype(jnp.bfloat16), wf, preferred_element_type=jnp.float32) + bf
    # lanes >= OUTPUT_DIM of att are exactly 0 (zero-padded weight cols / biases)

    # ---- LayerNorm over the OUTPUT_DIM valid lanes (two independent reductions)
    inv_n = 1.0 / OUTPUT_DIM
    mean = jnp.sum(att, axis=-1, keepdims=True) * inv_n
    ex2 = jnp.sum(att * att, axis=-1, keepdims=True) * inv_n
    var = ex2 - mean * mean
    norm = (att - mean) * lax.rsqrt(var + LN_EPS) * ln_g + ln_b
    # padded lanes of norm are 0 because ln_g / ln_b are zero-padded there.

    # ---- fused heads: one lane-dense matmul ----------------------------------
    heads = jnp.dot(norm.astype(jnp.bfloat16), wh, preferred_element_type=jnp.float32) + bh
    lane = lax.broadcasted_iota(jnp.int32, heads.shape, 1)

    # performance head: exact sigmoid on lane 0
    sig = 1.0 / (1.0 + jnp.exp(-heads))

    # safety + quality softmax: one shared max and one shared sum by stacking the
    # two masked logit sets along the sublane axis.
    safe_mask = (lane >= 1) & (lane < 1 + NUM_SAFETY)
    qual_mask = (lane >= 1 + NUM_SAFETY) & (lane < 1 + NUM_SAFETY + NUM_QUALITY)
    s_l = jnp.where(safe_mask, heads, NEG_BIG)
    q_l = jnp.where(qual_mask, heads, NEG_BIG)
    sq = jnp.concatenate([s_l, q_l], axis=0)                    # (2B, 128)
    mx = jnp.max(sq, axis=-1, keepdims=True)
    e = jnp.exp(sq - mx)                                        # masked lanes -> 0
    dn = jnp.sum(e, axis=-1, keepdims=True)
    p = e / dn                                                  # exact division
    out = jnp.where(lane == 0, sig, 0.0) + p[:B] + p[B:]

    # ---- pack normalized hidden into lanes [NORM_OFF, NORM_OFF+OUTPUT_DIM) ----
    # roll by 64 on a 128-lane vreg moves norm[:, 0:32] to lanes 64..95; all other
    # source lanes are zero, so a single add composes the fused output slab.
    out_ref[...] = out + pltpu.roll(norm, shift=NORM_OFF, axis=1)


# -------------------- one-time parameter layout / folding --------------------
def prepare_params(params):
    """Transpose / fold / pack PyTorch-layout params into kernel layout. Call ONCE."""

    def t(w):   # PyTorch Linear weight (out, in) -> (in, out)
        return jnp.asarray(w, jnp.float32).T

    def r(b):   # bias (out,) -> (1, out)
        return jnp.asarray(b, jnp.float32).reshape(1, -1)

    w1, b1 = t(params["w1"]), r(params["b1"])
    w2, b2 = t(params["w2"]), r(params["b2"])
    w3, b3 = t(params["w3"]), r(params["b3"])
    wv, bv = t(params["wv"]), r(params["bv"])
    wo, bo = t(params["wo"]), r(params["bo"])

    # Fold the three consecutive linears (no nonlinearity between them):
    #   att = ((h @ w3 + b3) @ wv + bv) @ wo + bo = h @ (w3 wv wo) + ((b3 wv + bv) wo + bo)
    wf = w3 @ wv @ wo                              # (HIDDEN_DIM, OUTPUT_DIM)
    bf = (b3 @ wv + bv) @ wo + bo                  # (1, OUTPUT_DIM)

    # Fuse the three heads: columns [0]=perf, [1:6]=safety, [6:9]=quality.
    wh_dense = jnp.concatenate([t(params["wp"]), t(params["ws"]), t(params["wq"])], axis=1)
    bh_dense = jnp.concatenate([r(params["bp"]), r(params["bs"]), r(params["bq"])], axis=1)

    # ---- packed bf16 weight slab: every matrix zero-padded to 128 lanes, stacked
    # along rows at 16-aligned offsets (one DMA, lane-dense loads, bf16 MXU feeds).
    def pad_w(w, rows):
        out = jnp.zeros((rows, LANES), jnp.float32)
        return out.at[:w.shape[0], :w.shape[1]].set(w)

    wslab = jnp.concatenate(
        [pad_w(w1, INPUT_DIM),        # rows [W1_OFF, W1_OFF+INPUT_DIM)
         pad_w(w2, LANES),            # rows [W2_OFF, ...)
         pad_w(wf, LANES),            # rows [WF_OFF, ...)
         pad_w(wh_dense, LANES)],     # rows [WH_OFF, ...)
        axis=0).astype(jnp.bfloat16)  # (W_ROWS, 128)

    # ---- packed f32 bias/affine slab: one (8, 128) tile ----
    def pad_row(v):
        out = jnp.zeros((1, LANES), jnp.float32)
        return out.at[:, :v.shape[1]].set(v)

    bslab = jnp.concatenate(
        [pad_row(b1), pad_row(b2), pad_row(bf),
         pad_row(r(params["ln_g"])), pad_row(r(params["ln_b"])),
         pad_row(bh_dense),
         jnp.zeros((2, LANES), jnp.float32)],
        axis=0)                                    # (8, 128)

    return {"wslab": wslab, "bslab": bslab}


# ------------------------------- wrapper --------------------------------------
def seal_forward(x, prepped):
    """x: (B, INPUT_DIM) float32. prepped: output of prepare_params()."""
    B = x.shape[0]
    x = x.astype(jnp.float32)
    wslab, bslab = prepped["wslab"], prepped["bslab"]

    # Single grid step, whole-array blocks (total resident footprint ~150 KB,
    # trivially fits VMEM on v5e/v6e/v7x).  For large serving batches, split the
    # batch axis into grid=(n,) with dimension_semantics=("parallel",) to use both
    # v7x TensorCores.
    out = pl.pallas_call(
        _seal_kernel,
        out_shape=jax.ShapeDtypeStruct((B, LANES), jnp.float32),
        grid_spec=pl.GridSpec(
            grid=(1,),
            in_specs=[
                pl.BlockSpec(x.shape, lambda i: (0, 0)),
                pl.BlockSpec(wslab.shape, lambda i: (0, 0)),
                pl.BlockSpec(bslab.shape, lambda i: (0, 0)),
            ],
            out_specs=pl.BlockSpec((B, LANES), lambda i: (0, 0)),
        ),
        compiler_params=pltpu.CompilerParams(
            dimension_semantics=("arbitrary",),
        ),
    )(x, wslab, bslab)

    return {
        "hidden_representation": out[:, NORM_OFF:NORM_OFF + OUTPUT_DIM],
        "performance_score": out[:, 0:1],
        "safety_scores": out[:, 1:1 + NUM_SAFETY],
        "quality_scores": out[:, 1 + NUM_SAFETY:1 + NUM_SAFETY + NUM_QUALITY],
    }


# ------------------------- deterministic parameter init -----------------------
def init_params(key):
    keys = jax.random.split(key, 8)
    sd = 0.02

    def w(k, shape):  # PyTorch layout: (out_features, in_features)
        return jax.random.normal(k, shape, jnp.float32) * sd

    return {
        "w1": w(keys[0], (HIDDEN_DIM, INPUT_DIM)),  "b1": jnp.zeros((HIDDEN_DIM,), jnp.float32),
        "w2": w(keys[1], (HIDDEN_DIM, HIDDEN_DIM)), "b2": jnp.zeros((HIDDEN_DIM,), jnp.float32),
        "w3": w(keys[2], (OUTPUT_DIM, HIDDEN_DIM)), "b3": jnp.zeros((OUTPUT_DIM,), jnp.float32),
        # MHA: only the V slice of in_proj and the out_proj matter for seq_len==1
        "wv": w(keys[3], (OUTPUT_DIM, OUTPUT_DIM)), "bv": jnp.zeros((OUTPUT_DIM,), jnp.float32),
        "wo": w(keys[4], (OUTPUT_DIM, OUTPUT_DIM)), "bo": jnp.zeros((OUTPUT_DIM,), jnp.float32),
        "ln_g": jnp.ones((OUTPUT_DIM,), jnp.float32), "ln_b": jnp.zeros((OUTPUT_DIM,), jnp.float32),
        "wp": w(keys[5], (1, OUTPUT_DIM)),           "bp": jnp.zeros((1,), jnp.float32),
        "ws": w(keys[6], (NUM_SAFETY, OUTPUT_DIM)),  "bs": jnp.zeros((NUM_SAFETY,), jnp.float32),
        "wq": w(keys[7], (NUM_QUALITY, OUTPUT_DIM)), "bq": jnp.zeros((NUM_QUALITY,), jnp.float32),
    }


# ------------------------- pure-JAX f32 reference -----------------------------
def _reference(x, params):
    def lin(h, wname, bname):
        return h @ jnp.asarray(params[wname], jnp.float32).T + jnp.asarray(params[bname], jnp.float32)

    h = jax.nn.relu(lin(x, "w1", "b1"))
    h = jax.nn.relu(lin(h, "w2", "b2"))
    h = lin(h, "w3", "b3")
    att = lin(lin(h, "wv", "bv"), "wo", "bo")       # seq_len==1 attention
    mean = att.mean(-1, keepdims=True)
    var = ((att - mean) ** 2).mean(-1, keepdims=True)
    norm = (att - mean) / jnp.sqrt(var + LN_EPS) * params["ln_g"] + params["ln_b"]
    perf = jax.nn.sigmoid(lin(norm, "wp", "bp"))
    safe = jax.nn.softmax(lin(norm, "ws", "bs"), axis=-1)
    qual = jax.nn.softmax(lin(norm, "wq", "bq"), axis=-1)
    return norm, perf, safe, qual


if __name__ == "__main__":
    key = jax.random.PRNGKey(0)
    pkey, xkey = jax.random.split(key)
    params = init_params(pkey)
    prepped = prepare_params(params)                     # one-time layout/fold/pack
    x = jax.random.normal(xkey, (BATCH, INPUT_DIM), jnp.float32)

    out = seal_forward(x, prepped)
    jax.block_until_ready(out)

    assert out["hidden_representation"].shape == (BATCH, OUTPUT_DIM)
    assert out["performance_score"].shape == (BATCH, 1)
    assert out["safety_scores"].shape == (BATCH, NUM_SAFETY)
    assert out["quality_scores"].shape == (BATCH, NUM_QUALITY)

    # exact-division softmax: rows sum to ~1
    assert jnp.allclose(out["safety_scores"].sum(-1), 1.0, atol=1e-4)
    assert jnp.allclose(out["quality_scores"].sum(-1), 1.0, atol=1e-4)

    # compare against pure-JAX f32 reference (loose tol: bf16 MXU operands)
    norm_r, perf_r, safe_r, qual_r = _reference(x, params)
    assert jnp.allclose(out["hidden_representation"], norm_r, atol=5e-2)
    assert jnp.allclose(out["performance_score"], perf_r, atol=5e-2)
    assert jnp.allclose(out["safety_scores"], safe_r, atol=5e-2)
    assert jnp.allclose(out["quality_scores"], qual_r, atol=5e-2)

    print("KERNEL_OK")
</pallas_src>

<mosaic_0001>
module attributes {stable_mosaic.version = 11 : i64} {
  func.func @_seal_kernel(%arg0: i32, %arg1: memref<32x64xf32, #tpu.memory_space<vmem>>, %arg2: memref<448x128xbf16, #tpu.memory_space<vmem>>, %arg3: memref<8x128xf32, #tpu.memory_space<vmem>>, %arg4: memref<32x128xf32, #tpu.memory_space<vmem>>) attributes {dimension_semantics = [#tpu.dimension_semantics<arbitrary>], iteration_bounds = array<i64: 1>, scalar_prefetch = 0 : i64, scratch_operands = 0 : i64, tpu.core_type = #tpu.core_type<tc>, window_params = [{pipeline_mode = #tpu.pipeline_mode<synchronous>, transform_indices = @transform_0, window_bounds = array<i64: 32, 64>}, {pipeline_mode = #tpu.pipeline_mode<synchronous>, transform_indices = @transform_1, window_bounds = array<i64: 448, 128>}, {pipeline_mode = #tpu.pipeline_mode<synchronous>, transform_indices = @transform_2, window_bounds = array<i64: 8, 128>}, {pipeline_mode = #tpu.pipeline_mode<synchronous>, transform_indices = @transform_3, window_bounds = array<i64: 32, 128>}]} {
    %c0 = arith.constant 0 : index
    %c0_0 = arith.constant 0 : index
    %0 = vector.load %arg3[%c0, %c0_0] : memref<8x128xf32, #tpu.memory_space<vmem>>, vector<8x128xf32>
    %1 = vector.extract_strided_slice %0 {offsets = [0, 0], sizes = [1, 128], strides = [1, 1]} : vector<8x128xf32> to vector<1x128xf32>
    %2 = vector.extract_strided_slice %0 {offsets = [1, 0], sizes = [1, 128], strides = [1, 1]} : vector<8x128xf32> to vector<1x128xf32>
    %3 = vector.extract_strided_slice %0 {offsets = [2, 0], sizes = [1, 128], strides = [1, 1]} : vector<8x128xf32> to vector<1x128xf32>
    %4 = vector.extract_strided_slice %0 {offsets = [3, 0], sizes = [1, 128], strides = [1, 1]} : vector<8x128xf32> to vector<1x128xf32>
    %5 = vector.extract_strided_slice %0 {offsets = [4, 0], sizes = [1, 128], strides = [1, 1]} : vector<8x128xf32> to vector<1x128xf32>
    %6 = vector.extract_strided_slice %0 {offsets = [5, 0], sizes = [1, 128], strides = [1, 1]} : vector<8x128xf32> to vector<1x128xf32>
    %c0_1 = arith.constant 0 : index
    %c0_2 = arith.constant 0 : index
    %7 = vector.load %arg2[%c0_1, %c0_2] : memref<448x128xbf16, #tpu.memory_space<vmem>>, vector<64x128xbf16>
    %c64 = arith.constant 64 : index
    %c0_3 = arith.constant 0 : index
    %8 = vector.load %arg2[%c64, %c0_3] : memref<448x128xbf16, #tpu.memory_space<vmem>>, vector<128x128xbf16>
    %c192 = arith.constant 192 : index
    %c0_4 = arith.constant 0 : index
    %9 = vector.load %arg2[%c192, %c0_4] : memref<448x128xbf16, #tpu.memory_space<vmem>>, vector<128x128xbf16>
    %c320 = arith.constant 320 : index
    %c0_5 = arith.constant 0 : index
    %10 = vector.load %arg2[%c320, %c0_5] : memref<448x128xbf16, #tpu.memory_space<vmem>>, vector<128x128xbf16>
    %c0_6 = arith.constant 0 : index
    %c0_7 = arith.constant 0 : index
    %11 = vector.load %arg1[%c0_6, %c0_7] : memref<32x64xf32, #tpu.memory_space<vmem>>, vector<32x64xf32>
    %12 = arith.truncf %11 : vector<32x64xf32> to vector<32x64xbf16>
    %cst = arith.constant dense<0.000000e+00> : vector<32x128xf32>
    %13 = tpu.matmul %12, %7, %cst {dimension_numbers = #tpu.dot_dimension_numbers<[1], [0], [0], [1], [0, 0, 1, 1], [], []>} : vector<32x64xbf16>, vector<64x128xbf16>, vector<32x128xf32> -> vector<32x128xf32>
    %14 = vector.broadcast %1 : vector<1x128xf32> to vector<32x128xf32>
    %15 = arith.addf %13, %14 : vector<32x128xf32>
    %cst_8 = arith.constant 0.000000e+00 : f32
    %16 = vector.broadcast %cst_8 : f32 to vector<32x128xf32>
    %17 = arith.maximumf %15, %16 : vector<32x128xf32>
    %18 = arith.truncf %17 : vector<32x128xf32> to vector<32x128xbf16>
    %cst_9 = arith.constant dense<0.000000e+00> : vector<32x128xf32>
    %19 = tpu.matmul %18, %8, %cst_9 {dimension_numbers = #tpu.dot_dimension_numbers<[1], [0], [0], [1], [0, 0, 1, 1], [], []>} : vector<32x128xbf16>, vector<128x128xbf16>, vector<32x128xf32> -> vector<32x128xf32>
    %20 = vector.broadcast %2 : vector<1x128xf32> to vector<32x128xf32>
    %21 = arith.addf %19, %20 : vector<32x128xf32>
    %cst_10 = arith.constant 0.000000e+00 : f32
    %22 = vector.broadcast %cst_10 : f32 to vector<32x128xf32>
    %23 = arith.maximumf %21, %22 : vector<32x128xf32>
    %24 = arith.truncf %23 : vector<32x128xf32> to vector<32x128xbf16>
    %cst_11 = arith.constant dense<0.000000e+00> : vector<32x128xf32>
    %25 = tpu.matmul %24, %9, %cst_11 {dimension_numbers = #tpu.dot_dimension_numbers<[1], [0], [0], [1], [0, 0, 1, 1], [], []>} : vector<32x128xbf16>, vector<128x128xbf16>, vector<32x128xf32> -> vector<32x128xf32>
    %26 = vector.broadcast %3 : vector<1x128xf32> to vector<32x128xf32>
    %27 = arith.addf %25, %26 : vector<32x128xf32>
    %cst_12 = arith.constant dense<0.000000e+00> : vector<32xf32>
    %28 = vector.multi_reduction <add>, %27, %cst_12 [1] : vector<32x128xf32> to vector<32xf32>
    %29 = vector.shape_cast %28 : vector<32xf32> to vector<32x1xf32>
    %cst_13 = arith.constant 3.125000e-02 : f32
    %30 = vector.broadcast %cst_13 : f32 to vector<32x1xf32>
    %31 = arith.mulf %29, %30 : vector<32x1xf32>
    %32 = arith.mulf %27, %27 : vector<32x128xf32>
    %cst_14 = arith.constant dense<0.000000e+00> : vector<32xf32>
    %33 = vector.multi_reduction <add>, %32, %cst_14 [1] : vector<32x128xf32> to vector<32xf32>
    %34 = vector.shape_cast %33 : vector<32xf32> to vector<32x1xf32>
    %cst_15 = arith.constant 3.125000e-02 : f32
    %35 = vector.broadcast %cst_15 : f32 to vector<32x1xf32>
    %36 = arith.mulf %34, %35 : vector<32x1xf32>
    %37 = arith.mulf %31, %31 : vector<32x1xf32>
    %38 = arith.subf %36, %37 : vector<32x1xf32>
    %39 = vector.broadcast %31 : vector<32x1xf32> to vector<32x128xf32>
    %40 = arith.subf %27, %39 : vector<32x128xf32>
    %cst_16 = arith.constant 9.99999974E-6 : f32
    %41 = vector.broadcast %cst_16 : f32 to vector<32x1xf32>
    %42 = arith.addf %38, %41 : vector<32x1xf32>
    %43 = math.rsqrt %42 : vector<32x1xf32>
    %44 = vector.broadcast %43 : vector<32x1xf32> to vector<32x128xf32>
    %45 = arith.mulf %40, %44 : vector<32x128xf32>
    %46 = vector.broadcast %4 : vector<1x128xf32> to vector<32x128xf32>
    %47 = arith.mulf %45, %46 : vector<32x128xf32>
    %48 = vector.broadcast %5 : vector<1x128xf32> to vector<32x128xf32>
    %49 = arith.addf %47, %48 : vector<32x128xf32>
    %50 = arith.truncf %49 : vector<32x128xf32> to vector<32x128xbf16>
    %cst_17 = arith.constant dense<0.000000e+00> : vector<32x128xf32>
    %51 = tpu.matmul %50, %10, %cst_17 {dimension_numbers = #tpu.dot_dimension_numbers<[1], [0], [0], [1], [0, 0, 1, 1], [], []>} : vector<32x128xbf16>, vector<128x128xbf16>, vector<32x128xf32> -> vector<32x128xf32>
    %52 = vector.broadcast %6 : vector<1x128xf32> to vector<32x128xf32>
    %53 = arith.addf %51, %52 : vector<32x128xf32>
    %54 = tpu.iota {dimensions = array<i32: 1>} : vector<32x128xi32>
    %cst_18 = arith.constant 0.000000e+00 : f32
    %55 = vector.broadcast %cst_18 : f32 to vector<32x128xf32>
    %56 = arith.subf %55, %53 : vector<32x128xf32>
    %57 = math.exp %56 : vector<32x128xf32>
    %cst_19 = arith.constant 1.000000e+00 : f32
    %58 = vector.broadcast %cst_19 : f32 to vector<32x128xf32>
    %59 = arith.addf %58, %57 : vector<32x128xf32>
    %cst_20 = arith.constant 1.000000e+00 : f32
    %60 = vector.broadcast %cst_20 : f32 to vector<32x128xf32>
    %61 = arith.divf %60, %59 : vector<32x128xf32>
    %c1_i32 = arith.constant 1 : i32
    %62 = vector.broadcast %c1_i32 : i32 to vector<32x128xi32>
    %63 = arith.cmpi sge, %54, %62 : vector<32x128xi32>
    %c6_i32 = arith.constant 6 : i32
    %64 = vector.broadcast %c6_i32 : i32 to vector<32x128xi32>
    %65 = arith.cmpi slt, %54, %64 : vector<32x128xi32>
    %66 = arith.andi %63, %65 : vector<32x128xi1>
    %c6_i32_21 = arith.constant 6 : i32
    %67 = vector.broadcast %c6_i32_21 : i32 to vector<32x128xi32>
    %68 = arith.cmpi sge, %54, %67 : vector<32x128xi32>
    %c9_i32 = arith.constant 9 : i32
    %69 = vector.broadcast %c9_i32 : i32 to vector<32x128xi32>
    %70 = arith.cmpi slt, %54, %69 : vector<32x128xi32>
    %71 = arith.andi %68, %70 : vector<32x128xi1>
    %cst_22 = arith.constant -1.000000e+30 : f32
    %72 = vector.broadcast %cst_22 : f32 to vector<32x128xf32>
    %73 = arith.select %66, %53, %72 : vector<32x128xi1>, vector<32x128xf32>
    %cst_23 = arith.constant -1.000000e+30 : f32
    %74 = vector.broadcast %cst_23 : f32 to vector<32x128xf32>
    %75 = arith.select %71, %53, %74 : vector<32x128xi1>, vector<32x128xf32>
    %76 = tpu.concatenate %73, %75 in 0 : vector<32x128xf32>, vector<32x128xf32> -> vector<64x128xf32>
    %cst_24 = arith.constant dense<0xFF800000> : vector<64xf32>
    %77 = vector.multi_reduction <maximumf>, %76, %cst_24 [1] : vector<64x128xf32> to vector<64xf32>
    %78 = vector.shape_cast %77 : vector<64xf32> to vector<64x1xf32>
    %79 = vector.broadcast %78 : vector<64x1xf32> to vector<64x128xf32>
    %80 = arith.subf %76, %79 : vector<64x128xf32>
    %81 = math.exp %80 : vector<64x128xf32>
    %cst_25 = arith.constant dense<0.000000e+00> : vector<64xf32>
    %82 = vector.multi_reduction <add>, %81, %cst_25 [1] : vector<64x128xf32> to vector<64xf32>
    %83 = vector.shape_cast %82 : vector<64xf32> to vector<64x1xf32>
    %84 = vector.broadcast %83 : vector<64x1xf32> to vector<64x128xf32>
    %85 = arith.divf %81, %84 : vector<64x128xf32>
    %c0_i32 = arith.constant 0 : i32
    %86 = vector.broadcast %c0_i32 : i32 to vector<32x128xi32>
    %87 = arith.cmpi eq, %54, %86 : vector<32x128xi32>
    %cst_26 = arith.constant 0.000000e+00 : f32
    %88 = vector.broadcast %cst_26 : f32 to vector<32x128xf32>
    %89 = arith.select %87, %61, %88 : vector<32x128xi1>, vector<32x128xf32>
    %90 = vector.extract_strided_slice %85 {offsets = [0, 0], sizes = [32, 128], strides = [1, 1]} : vector<64x128xf32> to vector<32x128xf32>
    %91 = arith.addf %89, %90 : vector<32x128xf32>
    %92 = vector.extract_strided_slice %85 {offsets = [32, 0], sizes = [32, 128], strides = [1, 1]} : vector<64x128xf32> to vector<32x128xf32>
    %93 = arith.addf %91, %92 : vector<32x128xf32>
    %c64_i32 = arith.constant 64 : i32
    %94 = tpu.dynamic_rotate %49 by %c64_i32 dim 1 : vector<32x128xf32>, i32 -> vector<32x128xf32>
    %95 = arith.addf %93, %94 : vector<32x128xf32>
    %c0_27 = arith.constant 0 : index
    %c0_28 = arith.constant 0 : index
    %96 = vector.load %arg4[%c0_27, %c0_28] : memref<32x128xf32, #tpu.memory_space<vmem>>, vector<32x128xf32>
    tpu.vector_store %arg4[%c0_27, %c0_28], %95 {strides = array<i32>} : memref<32x128xf32, #tpu.memory_space<vmem>>, vector<32x128xf32>,
    return
  }
  func.func @transform_0(%arg0: i32) -> (i32, i32) {
    %c0_i32 = arith.constant 0 : i32
    %c0_i32_0 = arith.constant 0 : i32
    %c0_i32_1 = arith.constant 0 : i32
    return %c0_i32, %c0_i32_0 : i32, i32
  }
  func.func @transform_1(%arg0: i32) -> (i32, i32) {
    %c0_i32 = arith.constant 0 : i32
    %c0_i32_0 = arith.constant 0 : i32
    %c0_i32_1 = arith.constant 0 : i32
    return %c0_i32, %c0_i32_0 : i32, i32
  }
  func.func @transform_2(%arg0: i32) -> (i32, i32) {
    %c0_i32 = arith.constant 0 : i32
    %c0_i32_0 = arith.constant 0 : i32
    %c0_i32_1 = arith.constant 0 : i32
    return %c0_i32, %c0_i32_0 : i32, i32
  }
  func.func @transform_3(%arg0: i32) -> (i32, i32) {
    %c0_i32 = arith.constant 0 : i32
    %c0_i32_0 = arith.constant 0 : i32
    %c0_i32_1 = arith.constant 0 : i32
    return %c0_i32, %c0_i32_0 : i32, i32
  }
}

</mosaic_0001>

<llo_original>
// kernel: tpu_custom_call.1
$region0: #{tpu_custom_call.1}
  #allocation0 [shape = 'u32[]', space=smem, size = 0x4, offset = 0x4, fixed_abs, tag = 'smem constant byte address 0x4 - core index']
  #allocation1 [shape = 'u32[144,128]{1,0:T(1,128)}', space=vmem, size = 0x12000, scoped, tag = 'internal scratch']
  %s0 = inlined_call_operand.hbm [shape: f32[32,64], index: 0, kind: input, shape index: {}]
  %s1 = inlined_call_operand.hbm [shape: bf16[448,128], index: 1, kind: input, shape index: {}]
  %s2 = inlined_call_operand.hbm [shape: f32[8,128], index: 2, kind: input, shape index: {}]
  %s3 = inlined_call_operand.hbm [shape: f32[32,128], index: 3, kind: output, shape index: {}]
  %s4 = sld [smem:[#allocation0]]
  $region34: #{tpu_custom_call.1} parent=0
    _
  %s6 = ssub.s32 1, %s4
  %s7 = scalar_select 0, %s6, %s4
  $region1: #{tpu_custom_call.1} parent=0
    #allocation2 [shape = 'u8[16384]{0}', space=vmem, size = 0x4000, scoped, tag = 'input window, operand 0, single buffered']
    #allocation3 [shape = 's32[1]{0}', space=sflag, size = 0x4, scoped, tag = 'scoped memory for tpu_custom_call.1']
    #allocation4 [shape = 's32[1]{0}', space=sflag, size = 0x4, scoped, tag = 'scoped memory for tpu_custom_call.1']
    #allocation5 [shape = 'u8[114688]{0}', space=vmem, size = 0x1c000, scoped, tag = 'input window, operand 1, single buffered']
    #allocation6 [shape = 's32[1]{0}', space=sflag, size = 0x4, scoped, tag = 'scoped memory for tpu_custom_call.1']
    #allocation7 [shape = 'u8[4096]{0}', space=vmem, size = 0x1000, scoped, tag = 'input window, operand 2, single buffered']
    #allocation8 [shape = 'u8[16384]{0}', space=vmem, size = 0x4000, scoped, tag = 'output window, operand 0, single buffered']
    %8 = vsyncpa [#allocation3], 0
    %9 = vsyncpa [#allocation6], 0
    %10 = vsyncpa [#allocation4], 0
    // Predicated region
    $region2: #{tpu_custom_call.1} parent=1 // pred_check
      _
    $region3: #{tpu_custom_call.1} parent=1 // pred_check_branch
      %12 = sbr.rel (0) target = $region5
    $region4: #{tpu_custom_call.1} parent=1 // pred_region
      %s14 = ssub.s32 512, 512
      %15 = vsyncadd [#allocation3], %s14
      %s16 = sshll.u32 [#allocation2], 4
      %s17 = int_to_ptr.vmem [resolvable:$true] %s16
      %22 = dma.hbm_to_vmem [thread:$0]  %s0, 512, %s17, [#allocation3], 128, 128, 8
    $region5: #{tpu_custom_call.1} parent=1 // pred_fallthru
      _
    // Predicated region
    $region6: #{tpu_custom_call.1} parent=1 // pred_check
      _
    $region7: #{tpu_custom_call.1} parent=1 // pred_check_branch
      %24 = sbr.rel (0) target = $region9
    $region8: #{tpu_custom_call.1} parent=1 // pred_region
      %s26 = ssub.s32 3584, 3584
      %27 = vsyncadd [#allocation6], %s26
      %s28 = sshll.u32 [#allocation5], 4
      %s29 = int_to_ptr.vmem [resolvable:$true] %s28
      %34 = dma.hbm_to_vmem [thread:$0]  %s1, 3584, %s29, [#allocation6], 64, 64, 4
    $region9: #{tpu_custom_call.1} parent=1 // pred_fallthru
      _
    // Predicated region
    $region10: #{tpu_custom_call.1} parent=1 // pred_check
      _
    $region11: #{tpu_custom_call.1} parent=1 // pred_check_branch
      %36 = sbr.rel (0) target = $region13
    $region12: #{tpu_custom_call.1} parent=1 // pred_region
      %s38 = ssub.s32 128, 128
      %39 = vsyncadd [#allocation6], %s38
      %s41 = sshll.u32 [#allocation7], 4
      %s42 = int_to_ptr.vmem [resolvable:$true] %s41
      %44 = dma.hbm_to_vmem [thread:$0]  %s2, 128, %s42, [#allocation6]
    $region13: #{tpu_custom_call.1} parent=1 // pred_fallthru
      _
    // Predicated region
    $region14: #{tpu_custom_call.1} parent=1 // pred_check
      _
    $region15: #{tpu_custom_call.1} parent=1 // pred_check_branch
      %46 = sbr.rel (0) target = $region17
    $region16: #{tpu_custom_call.1} parent=1 // pred_region
      %47 = dma.done [#allocation3], 512
    $region17: #{tpu_custom_call.1} parent=1 // pred_fallthru
      _
    // Predicated region
    $region18: #{tpu_custom_call.1} parent=1 // pred_check
      _
    $region19: #{tpu_custom_call.1} parent=1 // pred_check_branch
      %49 = sbr.rel (0) target = $region21
    $region20: #{tpu_custom_call.1} parent=1 // pred_region
      %50 = dma.done [#allocation6], 3584
    $region21: #{tpu_custom_call.1} parent=1 // pred_fallthru
      _
    // Predicated region
    $region22: #{tpu_custom_call.1} parent=1 // pred_check
      _
    $region23: #{tpu_custom_call.1} parent=1 // pred_check_branch
      %52 = sbr.rel (0) target = $region25
    $region24: #{tpu_custom_call.1} parent=1 // pred_region
      %53 = dma.done [#allocation6], 128
    $region25: #{tpu_custom_call.1} parent=1 // pred_fallthru
      _
    %v55 = vld [vmem:[#allocation7] sm:$0xff]
    %v56 = vld [vmem:[#allocation5] sm:$0xf]
    %v57 = vld [vmem:[#allocation5 + $0x4] sm:$0xf]
    %v58 = vld [vmem:[#allocation5 + $0x8] sm:$0xf]
    %v59 = vld [vmem:[#allocation5 + $0xc] sm:$0xf]
    %v60 = vld [vmem:[#allocation5 + $0x10] sm:$0xf]
    %v61 = vld [vmem:[#allocation5 + $0x14] sm:$0xf]
    %v62 = vld [vmem:[#allocation5 + $0x18] sm:$0xf]
    %v63 = vld [vmem:[#allocation5 + $0x1c] sm:$0xf]
    %v64 = vld [vmem:[#allocation5 + $0x20] sm:$0xf]
    %v65 = vld [vmem:[#allocation5 + $0x24] sm:$0xf]
    %v66 = vld [vmem:[#allocation5 + $0x28] sm:$0xf]
    %v67 = vld [vmem:[#allocation5 + $0x2c] sm:$0xf]
    %v68 = vld [vmem:[#allocation5 + $0x30] sm:$0xf]
    %v69 = vld [vmem:[#allocation5 + $0x34] sm:$0xf]
    %v70 = vld [vmem:[#allocation5 + $0x38] sm:$0xf]
    %v71 = vld [vmem:[#allocation5 + $0x3c] sm:$0xf]
    %v72 = vld [vmem:[#allocation5 + $0x40] sm:$0xf]
    %v73 = vld [vmem:[#allocation5 + $0x44] sm:$0xf]
    %v74 = vld [vmem:[#allocation5 + $0x48] sm:$0xf]
    %v75 = vld [vmem:[#allocation5 + $0x4c] sm:$0xf]
    %v76 = vld [vmem:[#allocation5 + $0x50] sm:$0xf]
    %v77 = vld [vmem:[#allocation5 + $0x54] sm:$0xf]
    %v78 = vld [vmem:[#allocation5 + $0x58] sm:$0xf]
    %v79 = vld [vmem:[#allocation5 + $0x5c] sm:$0xf]
    %v80 = vld [vmem:[#allocation5 + $0x60] sm:$0xf]
    %v81 = vld [vmem:[#allocation5 + $0x64] sm:$0xf]
    %v82 = vld [vmem:[#allocation5 + $0x68] sm:$0xf]
    %v83 = vld [vmem:[#allocation5 + $0x6c] sm:$0xf]
    %v84 = vld [vmem:[#allocation5 + $0x70] sm:$0xf]
    %v85 = vld [vmem:[#allocation5 + $0x74] sm:$0xf]
    %v86 = vld [vmem:[#allocation5 + $0x78] sm:$0xf]
    %v87 = vld [vmem:[#allocation5 + $0x7c] sm:$0xf]
    %v88 = vld [vmem:[#allocation5 + $0x80] sm:$0xf]
    %v89 = vld [vmem:[#allocation5 + $0x84] sm:$0xf]
    %v90 = vld [vmem:[#allocation5 + $0x88] sm:$0xf]
    %v91 = vld [vmem:[#allocation5 + $0x8c] sm:$0xf]
    %v92 = vld [vmem:[#allocation5 + $0x90] sm:$0xf]
    %v93 = vld [vmem:[#allocation5 + $0x94] sm:$0xf]
    %v94 = vld [vmem:[#allocation5 + $0x98] sm:$0xf]
    %v95 = vld [vmem:[#allocation5 + $0x9c] sm:$0xf]
    %v96 = vld [vmem:[#allocation5 + $0xa0] sm:$0xf]
    %v97 = vld [vmem:[#allocation5 + $0xa4] sm:$0xf]
    %v98 = vld [vmem:[#allocation5 + $0xa8] sm:$0xf]
    %v99 = vld [vmem:[#allocation5 + $0xac] sm:$0xf]
    %v100 = vld [vmem:[#allocation5 + $0xb0] sm:$0xf]
    %v101 = vld [vmem:[#allocation5 + $0xb4] sm:$0xf]
    %v102 = vld [vmem:[#allocation5 + $0xb8] sm:$0xf]
    %v103 = vld [vmem:[#allocation5 + $0xbc] sm:$0xf]
    %v104 = vld [vmem:[#allocation5 + $0xc0] sm:$0xf]
    %v105 = vld [vmem:[#allocation5 + $0xc4] sm:$0xf]
    %v106 = vld [vmem:[#allocation5 + $0xc8] sm:$0xf]
    %v107 = vld [vmem:[#allocation5 + $0xcc] sm:$0xf]
    %v108 = vld [vmem:[#allocation5 + $0xd0] sm:$0xf]
    %v109 = vld [vmem:[#allocation5 + $0xd4] sm:$0xf]
    %v110 = vld [vmem:[#allocation5 + $0xd8] sm:$0xf]
    %v111 = vld [vmem:[#allocation5 + $0xdc] sm:$0xf]
    %v112 = vld [vmem:[#allocation2] sm:$0xff]
    %v113 = vld [vmem:[#allocation2 + $0x8] sm:$0xff]
    %v114 = vld [vmem:[#allocation2 + $0x10] sm:$0xff]
    %v115 = vld [vmem:[#allocation2 + $0x18] sm:$0xff]
    %v116 = vpack.c.bf16 %v113, %v112
    %v117 = vpack.c.bf16 %v115, %v114
    %v118 = vlaneseq
    %v119 = vshrl.u32 %v118, 7
    %v120 = vsub.s32 0, %v119
    %v121 = vrot.slane %v55, %v120
    %v130 = vunpack.c.l.b16 %v56
    %v131 = vunpack.c.l.b16 %v57
    %v132 = vunpack.c.l.b16 %v58
    %v133 = vunpack.c.l.b16 %v59
    %v134 = vunpack.c.l.b16 %v60
    %v135 = vunpack.c.l.b16 %v61
    %v136 = vunpack.c.l.b16 %v62
    %v137 = vunpack.c.l.b16 %v63
    %v138 = vpack.c.b16 %v131, %v130
    %v139 = vpack.c.b16 %v133, %v132
    %v140 = vpack.c.b16 %v135, %v134
    %v141 = vpack.c.b16 %v137, %v136
    %vm146 = vcmask 523264
    %v148 = vsel %vm146, %v116, 0
    %v151 = vsel %vm146, %v117, 0
    %153 = vmatprep.subr.bf16.mxu0 0
    %154 = vmatpush1.bf16.msra.mxu0 %v138
    %155 = vmatprep.subr.bf16.mxu0 0
    %156 = vmatpush1.bf16.msra.mxu0 %v139
    %157 = vmatprep.subr.bf16.mxu0 0
    %158 = vmatpush1.bf16.msra.mxu0 %v140
    %159 = vmatprep.subr.bf16.mxu0 0
    %160 = vmatpush1.bf16.msra.mxu0 %v141
    %161 = vmatprep.subr.bf16.mxu0 0
    %162 = vmatpush1.bf16.msra.mxu0 0
    %163 = vmatprep.subr.bf16.mxu0 0
    %164 = vmatpush1.bf16.msra.mxu0 0
    %165 = vmatprep.subr.bf16.mxu0 0
    %166 = vmatpush1.bf16.msra.mxu0 0
    %167 = vmatprep.subr.bf16.mxu0 0
    %168 = vmatpush1.bf16.msra.mxu0 0
    %169 = vmatprep.subr.bf16.mxu0 0
    %170 = vmatpush1.bf16.msra.mxu0 0
    %171 = vmatprep.subr.bf16.mxu0 0
    %172 = vmatpush1.bf16.msra.mxu0 0
    %173 = vmatprep.subr.bf16.mxu0 0
    %174 = vmatpush1.bf16.msra.mxu0 0
    %175 = vmatprep.subr.bf16.mxu0 0
    %176 = vmatpush1.bf16.msra.mxu0 0
    %177 = vmatprep.subr.bf16.mxu0 0
    %178 = vmatpush1.bf16.msra.mxu0 0
    %179 = vmatprep.subr.bf16.mxu0 0
    %180 = vmatpush1.bf16.msra.mxu0 0
    %181 = vmatprep.subr.bf16.mxu0 0
    %182 = vmatpush1.bf16.msra.mxu0 0
    %183 = vmatprep.subr.bf16.mxu0 0
    %184 = vmatpush1.bf16.msra.mxu0 0
    %185 = vmatprep.mubr.bf16.mxu0 0
    %186 = vmatmul.mubr.bf16.gmra.mrb[0].mxu0 %v148
    %v187 = vpop.f32.mrb[0].mxu0
    %v188 = vadd.f32 %v121, %v187
    %v189 = vpop.f32.mrb[0].mxu0
    %v190 = vpop.f32.mrb[0].mxu0
    %v191 = vadd.f32 %v121, %v190
    %v192 = vpop.f32.mrb[0].mxu0
    %193 = vmatprep.mubr.bf16.mxu0 0
    %194 = vmatmul.mubr.bf16.gmra.mrb[0].mxu0 %v151
    %v195 = vpop.f32.mrb[0].mxu0
    %v196 = vadd.f32 %v121, %v195
    %v197 = vpop.f32.mrb[0].mxu0
    %v198 = vpop.f32.mrb[0].mxu0
    %v199 = vadd.f32 %v121, %v198
    %v200 = vpop.f32.mrb[0].mxu0
    %201 = vdwg.mxu0
    %v202 = vmax.f32 %v188, 0.0
    %v203 = vmax.f32 %v191, 0.0
    %v204 = vmax.f32 %v196, 0.0
    %v205 = vmax.f32 %v199, 0.0
    %v206 = vpack.c.bf16 %v203, %v202
    %v207 = vpack.c.bf16 %v205, %v204
    %v208 = vlaneseq
    %v209 = vshrl.u32 %v208, 7
    %v210 = vsub.s32 1, %v209
    %v211 = vrot.slane %v55, %v210
    %v228 = vunpack.c.l.b16 %v64
    %v229 = vunpack.c.l.b16 %v65
    %v230 = vunpack.c.l.b16 %v66
    %v231 = vunpack.c.l.b16 %v67
    %v232 = vunpack.c.l.b16 %v68
    %v233 = vunpack.c.l.b16 %v69
    %v234 = vunpack.c.l.b16 %v70
    %v235 = vunpack.c.l.b16 %v71
    %v236 = vunpack.c.l.b16 %v72
    %v237 = vunpack.c.l.b16 %v73
    %v238 = vunpack.c.l.b16 %v74
    %v239 = vunpack.c.l.b16 %v75
    %v240 = vunpack.c.l.b16 %v76
    %v241 = vunpack.c.l.b16 %v77
    %v242 = vunpack.c.l.b16 %v78
    %v243 = vunpack.c.l.b16 %v79
    %v244 = vpack.c.b16 %v229, %v228
    %v245 = vpack.c.b16 %v231, %v230
    %v246 = vpack.c.b16 %v233, %v232
    %v247 = vpack.c.b16 %v235, %v234
    %v248 = vpack.c.b16 %v237, %v236
    %v249 = vpack.c.b16 %v239, %v238
    %v250 = vpack.c.b16 %v241, %v240
    %v251 = vpack.c.b16 %v243, %v242
    %260 = vmatprep.subr.bf16.mxu0 0
    %261 = vmatpush1.bf16.msra.mxu0 %v244
    %262 = vmatprep.subr.bf16.mxu0 0
    %263 = vmatpush1.bf16.msra.mxu0 %v245
    %264 = vmatprep.subr.bf16.mxu0 0
    %265 = vmatpush1.bf16.msra.mxu0 %v246
    %266 = vmatprep.subr.bf16.mxu0 0
    %267 = vmatpush1.bf16.msra.mxu0 %v247
    %268 = vmatprep.subr.bf16.mxu0 0
    %269 = vmatpush1.bf16.msra.mxu0 %v248
    %270 = vmatprep.subr.bf16.mxu0 0
    %271 = vmatpush1.bf16.msra.mxu0 %v249
    %272 = vmatprep.subr.bf16.mxu0 0
    %273 = vmatpush1.bf16.msra.mxu0 %v250
    %274 = vmatprep.subr.bf16.mxu0 0
    %275 = vmatpush1.bf16.msra.mxu0 %v251
    %276 = vmatprep.subr.bf16.mxu0 0
    %277 = vmatpush1.bf16.msra.mxu0 0
    %278 = vmatprep.subr.bf16.mxu0 0
    %279 = vmatpush1.bf16.msra.mxu0 0
    %280 = vmatprep.subr.bf16.mxu0 0
    %281 = vmatpush1.bf16.msra.mxu0 0
    %282 = vmatprep.subr.bf16.mxu0 0
    %283 = vmatpush1.bf16.msra.mxu0 0
    %284 = vmatprep.subr.bf16.mxu0 0
    %285 = vmatpush1.bf16.msra.mxu0 0
    %286 = vmatprep.subr.bf16.mxu0 0
    %287 = vmatpush1.bf16.msra.mxu0 0
    %288 = vmatprep.subr.bf16.mxu0 0
    %289 = vmatpush1.bf16.msra.mxu0 0
    %290 = vmatprep.subr.bf16.mxu0 0
    %291 = vmatpush1.bf16.msra.mxu0 0
    %292 = vmatprep.mubr.bf16.mxu0 0
    %293 = vmatmul.mubr.bf16.gmra.mrb[0].mxu0 %v206
    %v294 = vpop.f32.mrb[0].mxu0
    %v295 = vadd.f32 %v211, %v294
    %v296 = vpop.f32.mrb[0].mxu0
    %v297 = vpop.f32.mrb[0].mxu0
    %v298 = vadd.f32 %v211, %v297
    %v299 = vpop.f32.mrb[0].mxu0
    %300 = vmatprep.mubr.bf16.mxu0 0
    %301 = vmatmul.mubr.bf16.gmra.mrb[0].mxu0 %v207
    %v302 = vpop.f32.mrb[0].mxu0
    %v303 = vadd.f32 %v211, %v302
    %v304 = vpop.f32.mrb[0].mxu0
    %v305 = vpop.f32.mrb[0].mxu0
    %v306 = vadd.f32 %v211, %v305
    %v307 = vpop.f32.mrb[0].mxu0
    %308 = vdwg.mxu0
    %v309 = vmax.f32 %v295, 0.0
    %v310 = vmax.f32 %v298, 0.0
    %v311 = vmax.f32 %v303, 0.0
    %v312 = vmax.f32 %v306, 0.0
    %v313 = vpack.c.bf16 %v310, %v309
    %v314 = vpack.c.bf16 %v312, %v311
    %v315 = vlaneseq
    %v316 = vshrl.u32 %v315, 7
    %v317 = vsub.s32 2, %v316
    %v318 = vrot.slane %v55, %v317
    %v335 = vunpack.c.l.b16 %v80
    %v336 = vunpack.c.l.b16 %v81
    %v337 = vunpack.c.l.b16 %v82
    %v338 = vunpack.c.l.b16 %v83
    %v339 = vunpack.c.l.b16 %v84
    %v340 = vunpack.c.l.b16 %v85
    %v341 = vunpack.c.l.b16 %v86
    %v342 = vunpack.c.l.b16 %v87
    %v343 = vunpack.c.l.b16 %v88
    %v344 = vunpack.c.l.b16 %v89
    %v345 = vunpack.c.l.b16 %v90
    %v346 = vunpack.c.l.b16 %v91
    %v347 = vunpack.c.l.b16 %v92
    %v348 = vunpack.c.l.b16 %v93
    %v349 = vunpack.c.l.b16 %v94
    %v350 = vunpack.c.l.b16 %v95
    %v351 = vpack.c.b16 %v336, %v335
    %v352 = vpack.c.b16 %v338, %v337
    %v353 = vpack.c.b16 %v340, %v339
    %v354 = vpack.c.b16 %v342, %v341
    %v355 = vpack.c.b16 %v344, %v343
    %v356 = vpack.c.b16 %v346, %v345
    %v357 = vpack.c.b16 %v348, %v347
    %v358 = vpack.c.b16 %v350, %v349
    %367 = vmatprep.subr.bf16.mxu0 0
    %368 = vmatpush1.bf16.msra.mxu0 %v351
    %369 = vmatprep.subr.bf16.mxu0 0
    %370 = vmatpush1.bf16.msra.mxu0 %v352
    %371 = vmatprep.subr.bf16.mxu0 0
    %372 = vmatpush1.bf16.msra.mxu0 %v353
    %373 = vmatprep.subr.bf16.mxu0 0
    %374 = vmatpush1.bf16.msra.mxu0 %v354
    %375 = vmatprep.subr.bf16.mxu0 0
    %376 = vmatpush1.bf16.msra.mxu0 %v355
    %377 = vmatprep.subr.bf16.mxu0 0
    %378 = vmatpush1.bf16.msra.mxu0 %v356
    %379 = vmatprep.subr.bf16.mxu0 0
    %380 = vmatpush1.bf16.msra.mxu0 %v357
    %381 = vmatprep.subr.bf16.mxu0 0
    %382 = vmatpush1.bf16.msra.mxu0 %v358
    %383 = vmatprep.subr.bf16.mxu0 0
    %384 = vmatpush1.bf16.msra.mxu0 0
    %385 = vmatprep.subr.bf16.mxu0 0
    %386 = vmatpush1.bf16.msra.mxu0 0
    %387 = vmatprep.subr.bf16.mxu0 0
    %388 = vmatpush1.bf16.msra.mxu0 0
    %389 = vmatprep.subr.bf16.mxu0 0
    %390 = vmatpush1.bf16.msra.mxu0 0
    %391 = vmatprep.subr.bf16.mxu0 0
    %392 = vmatpush1.bf16.msra.mxu0 0
    %393 = vmatprep.subr.bf16.mxu0 0
    %394 = vmatpush1.bf16.msra.mxu0 0
    %395 = vmatprep.subr.bf16.mxu0 0
    %396 = vmatpush1.bf16.msra.mxu0 0
    %397 = vmatprep.subr.bf16.mxu0 0
    %398 = vmatpush1.bf16.msra.mxu0 0
    %399 = vmatprep.mubr.bf16.mxu0 0
    %400 = vmatmul.mubr.bf16.gmra.mrb[0].mxu0 %v313
    %v401 = vpop.f32.mrb[0].mxu0
    %v402 = vadd.f32 %v318, %v401
    %v403 = vpop.f32.mrb[0].mxu0
    %v404 = vpop.f32.mrb[0].mxu0
    %v405 = vadd.f32 %v318, %v404
    %v406 = vpop.f32.mrb[0].mxu0
    %407 = vmatprep.mubr.bf16.mxu0 0
    %408 = vmatmul.mubr.bf16.gmra.mrb[0].mxu0 %v314
    %v409 = vpop.f32.mrb[0].mxu0
    %v410 = vadd.f32 %v318, %v409
    %v411 = vpop.f32.mrb[0].mxu0
    %v412 = vpop.f32.mrb[0].mxu0
    %v413 = vadd.f32 %v318, %v412
    %v414 = vpop.f32.mrb[0].mxu0
    %415 = vdwg.mxu0
    %416 = vadd.xlane.f32.xlu0 %v402
    %v417 = vpop.xlane.xlu0 %416
    %418 = vadd.xlane.f32.xlu0 %v405
    %v419 = vpop.xlane.xlu0 %418
    %420 = vadd.xlane.f32.xlu0 %v410
    %v421 = vpop.xlane.xlu0 %420
    %422 = vadd.xlane.f32.xlu0 %v413
    %v423 = vpop.xlane.xlu0 %422
    %v424 = vmul.f32 %v417, 0.03125
    %v425 = vmul.f32 %v419, 0.03125
    %v426 = vmul.f32 %v421, 0.03125
    %v427 = vmul.f32 %v423, 0.03125
    %v428 = vmul.f32 %v402, %v402
    %v429 = vmul.f32 %v405, %v405
    %v430 = vmul.f32 %v410, %v410
    %v431 = vmul.f32 %v413, %v413
    %432 = vadd.xlane.f32.xlu0 %v428
    %v433 = vpop.xlane.xlu0 %432
    %434 = vadd.xlane.f32.xlu0 %v429
    %v435 = vpop.xlane.xlu0 %434
    %436 = vadd.xlane.f32.xlu0 %v430
    %v437 = vpop.xlane.xlu0 %436
    %438 = vadd.xlane.f32.xlu0 %v431
    %v439 = vpop.xlane.xlu0 %438
    %v440 = vmul.f32 %v433, 0.03125
    %v441 = vmul.f32 %v435, 0.03125
    %v442 = vmul.f32 %v437, 0.03125
    %v443 = vmul.f32 %v439, 0.03125
    %v444 = vmul.f32 %v424, %v424
    %v445 = vmul.f32 %v425, %v425
    %v446 = vmul.f32 %v426, %v426
    %v447 = vmul.f32 %v427, %v427
    %v448 = vsub.f32 %v440, %v444
    %v449 = vsub.f32 %v441, %v445
    %v450 = vsub.f32 %v442, %v446
    %v451 = vsub.f32 %v443, %v447
    %v452 = vsub.f32 %v402, %v424
    %v453 = vsub.f32 %v405, %v425
    %v454 = vsub.f32 %v410, %v426
    %v455 = vsub.f32 %v413, %v427
    %v456 = vadd.f32 %v448, 1e-05
    %v457 = vadd.f32 %v449, 1e-05
    %v458 = vadd.f32 %v450, 1e-05
    %v459 = vadd.f32 %v451, 1e-05
    %v460 = vrsqrt.pop %v456
    %v461 = vrsqrt.pop %v457
    %v462 = vrsqrt.pop %v458
    %v463 = vrsqrt.pop %v459
    %v464 = vmul.f32 %v452, %v460
    %v465 = vmul.f32 %v453, %v461
    %v466 = vmul.f32 %v454, %v462
    %v467 = vmul.f32 %v455, %v463
    %v468 = vlaneseq
    %v469 = vshrl.u32 %v468, 7
    %v470 = vsub.s32 3, %v469
    %v471 = vrot.slane %v55, %v470
    %v472 = vmul.f32 %v464, %v471
    %v473 = vmul.f32 %v465, %v471
    %v474 = vmul.f32 %v466, %v471
    %v475 = vmul.f32 %v467, %v471
    %v476 = vlaneseq
    %v477 = vshrl.u32 %v476, 7
    %v478 = vsub.s32 4, %v477
    %v479 = vrot.slane %v55, %v478
    %v480 = vadd.f32 %v472, %v479
    %v481 = vadd.f32 %v473, %v479
    %v482 = vadd.f32 %v474, %v479
    %v483 = vadd.f32 %v475, %v479
    %v484 = vpack.c.bf16 %v481, %v480
    %v485 = vpack.c.bf16 %v483, %v482
    %v486 = vlaneseq
    %v487 = vshrl.u32 %v486, 7
    %v488 = vsub.s32 5, %v487
    %v489 = vrot.slane %v55, %v488
    %v506 = vunpack.c.l.b16 %v96
    %v507 = vunpack.c.l.b16 %v97
    %v508 = vunpack.c.l.b16 %v98
    %v509 = vunpack.c.l.b16 %v99
    %v510 = vunpack.c.l.b16 %v100
    %v511 = vunpack.c.l.b16 %v101
    %v512 = vunpack.c.l.b16 %v102
    %v513 = vunpack.c.l.b16 %v103
    %v514 = vunpack.c.l.b16 %v104
    %v515 = vunpack.c.l.b16 %v105
    %v516 = vunpack.c.l.b16 %v106
    %v517 = vunpack.c.l.b16 %v107
    %v518 = vunpack.c.l.b16 %v108
    %v519 = vunpack.c.l.b16 %v109
    %v520 = vunpack.c.l.b16 %v110
    %v521 = vunpack.c.l.b16 %v111
    %v522 = vpack.c.b16 %v507, %v506
    %v523 = vpack.c.b16 %v509, %v508
    %v524 = vpack.c.b16 %v511, %v510
    %v525 = vpack.c.b16 %v513, %v512
    %v526 = vpack.c.b16 %v515, %v514
    %v527 = vpack.c.b16 %v517, %v516
    %v528 = vpack.c.b16 %v519, %v518
    %v529 = vpack.c.b16 %v521, %v520
    %538 = vmatprep.subr.bf16.mxu0 0
    %539 = vmatpush1.bf16.msra.mxu0 %v522
    %540 = vmatprep.subr.bf16.mxu0 0
    %541 = vmatpush1.bf16.msra.mxu0 %v523
    %542 = vmatprep.subr.bf16.mxu0 0
    %543 = vmatpush1.bf16.msra.mxu0 %v524
    %544 = vmatprep.subr.bf16.mxu0 0
    %545 = vmatpush1.bf16.msra.mxu0 %v525
    %546 = vmatprep.subr.bf16.mxu0 0
    %547 = vmatpush1.bf16.msra.mxu0 %v526
    %548 = vmatprep.subr.bf16.mxu0 0
    %549 = vmatpush1.bf16.msra.mxu0 %v527
    %550 = vmatprep.subr.bf16.mxu0 0
    %551 = vmatpush1.bf16.msra.mxu0 %v528
    %552 = vmatprep.subr.bf16.mxu0 0
    %553 = vmatpush1.bf16.msra.mxu0 %v529
    %554 = vmatprep.subr.bf16.mxu0 0
    %555 = vmatpush1.bf16.msra.mxu0 0
    %556 = vmatprep.subr.bf16.mxu0 0
    %557 = vmatpush1.bf16.msra.mxu0 0
    %558 = vmatprep.subr.bf16.mxu0 0
    %559 = vmatpush1.bf16.msra.mxu0 0
    %560 = vmatprep.subr.bf16.mxu0 0
    %561 = vmatpush1.bf16.msra.mxu0 0
    %562 = vmatprep.subr.bf16.mxu0 0
    %563 = vmatpush1.bf16.msra.mxu0 0
    %564 = vmatprep.subr.bf16.mxu0 0
    %565 = vmatpush1.bf16.msra.mxu0 0
    %566 = vmatprep.subr.bf16.mxu0 0
    %567 = vmatpush1.bf16.msra.mxu0 0
    %568 = vmatprep.subr.bf16.mxu0 0
    %569 = vmatpush1.bf16.msra.mxu0 0
    %570 = vmatprep.mubr.bf16.mxu0 0
    %571 = vmatmul.mubr.bf16.gmra.mrb[0].mxu0 %v484
    %v572 = vpop.f32.mrb[0].mxu0
    %v573 = vadd.f32 %v489, %v572
    %v574 = vpop.f32.mrb[0].mxu0
    %v575 = vpop.f32.mrb[0].mxu0
    %v576 = vadd.f32 %v489, %v575
    %v577 = vpop.f32.mrb[0].mxu0
    %578 = vmatprep.mubr.bf16.mxu0 0
    %579 = vmatmul.mubr.bf16.gmra.mrb[0].mxu0 %v485
    %v580 = vpop.f32.mrb[0].mxu0
    %v581 = vadd.f32 %v489, %v580
    %v582 = vpop.f32.mrb[0].mxu0
    %v583 = vpop.f32.mrb[0].mxu0
    %v584 = vadd.f32 %v489, %v583
    %v585 = vpop.f32.mrb[0].mxu0
    %586 = vdwg.mxu0
    %v587 = vlaneseq
    %v588 = vand.u32 %v587, 127
    %v589 = vsub.f32 0.0, %v573
    %v590 = vsub.f32 0.0, %v576
    %v591 = vsub.f32 0.0, %v581
    %v592 = vsub.f32 0.0, %v584
    %v593 = vmul.f32 %v589, 1.442695
    %v594 = vpow.pop %v593
    %v595 = vmul.f32 %v590, 1.442695
    %v596 = vpow.pop %v595
    %v597 = vmul.f32 %v591, 1.442695
    %v598 = vpow.pop %v597
    %v599 = vmul.f32 %v592, 1.442695
    %v600 = vpow.pop %v599
    %v601 = vadd.f32 %v594, 1.0
    %v602 = vadd.f32 %v596, 1.0
    %v603 = vadd.f32 %v598, 1.0
    %v604 = vadd.f32 %v600, 1.0
    %v605 = vrcp.pop %v601
    %v606 = vmul.f32 1.0, %v605
    %v607 = vrcp.pop %v602
    %v608 = vmul.f32 1.0, %v607
    %v609 = vrcp.pop %v603
    %v610 = vmul.f32 1.0, %v609
    %v611 = vrcp.pop %v604
    %v612 = vmul.f32 1.0, %v611
    %vm613 = vcmp.ge.s32.totalorder %v588, 1
    %vm614 = vcmp.lt.s32.totalorder %v588, 6
    %vm615 = vmand %vm613, %vm614
    %vm616 = vcmp.ge.s32.totalorder %v588, 6
    %vm617 = vcmp.lt.s32.totalorder %v588, 9
    %vm618 = vmand %vm616, %vm617
    %v619 = vsel %vm615, %v573, -1e+30
    %v620 = vsel %vm615, %v576, -1e+30
    %v621 = vsel %vm615, %v581, -1e+30
    %v622 = vsel %vm615, %v584, -1e+30
    %v623 = vsel %vm618, %v573, -1e+30
    %v624 = vsel %vm618, %v576, -1e+30
    %v625 = vsel %vm618, %v581, -1e+30
    %v626 = vsel %vm618, %v584, -1e+30
    %627 = vmax.xlane.f32.xlu0 %v619
    %v628 = vpop.xlane.xlu0 %627
    %629 = vmax.xlane.f32.xlu0 %v620
    %v630 = vpop.xlane.xlu0 %629
    %631 = vmax.xlane.f32.xlu0 %v621
    %v632 = vpop.xlane.xlu0 %631
    %633 = vmax.xlane.f32.xlu0 %v622
    %v634 = vpop.xlane.xlu0 %633
    %635 = vmax.xlane.f32.xlu0 %v623
    %v636 = vpop.xlane.xlu0 %635
    %637 = vmax.xlane.f32.xlu0 %v624
    %v638 = vpop.xlane.xlu0 %637
    %639 = vmax.xlane.f32.xlu0 %v625
    %v640 = vpop.xlane.xlu0 %639
    %641 = vmax.xlane.f32.xlu0 %v626
    %v642 = vpop.xlane.xlu0 %641
    %v643 = vsub.f32 %v619, %v628
    %v644 = vsub.f32 %v620, %v630
    %v645 = vsub.f32 %v621, %v632
    %v646 = vsub.f32 %v622, %v634
    %v647 = vsub.f32 %v623, %v636
    %v648 = vsub.f32 %v624, %v638
    %v649 = vsub.f32 %v625, %v640
    %v650 = vsub.f32 %v626, %v642
    %v651 = vmul.f32 %v643, 1.442695
    %v652 = vpow.pop %v651
    %v653 = vmul.f32 %v644, 1.442695
    %v654 = vpow.pop %v653
    %v655 = vmul.f32 %v645, 1.442695
    %v656 = vpow.pop %v655
    %v657 = vmul.f32 %v646, 1.442695
    %v658 = vpow.pop %v657
    %v659 = vmul.f32 %v647, 1.442695
    %v660 = vpow.pop %v659
    %v661 = vmul.f32 %v648, 1.442695
    %v662 = vpow.pop %v661
    %v663 = vmul.f32 %v649, 1.442695
    %v664 = vpow.pop %v663
    %v665 = vmul.f32 %v650, 1.442695
    %v666 = vpow.pop %v665
    %667 = vadd.xlane.f32.xlu0 %v652
    %v668 = vpop.xlane.xlu0 %667
    %669 = vadd.xlane.f32.xlu0 %v654
    %v670 = vpop.xlane.xlu0 %669
    %671 = vadd.xlane.f32.xlu0 %v656
    %v672 = vpop.xlane.xlu0 %671
    %673 = vadd.xlane.f32.xlu0 %v658
    %v674 = vpop.xlane.xlu0 %673
    %675 = vadd.xlane.f32.xlu0 %v660
    %v676 = vpop.xlane.xlu0 %675
    %677 = vadd.xlane.f32.xlu0 %v662
    %v678 = vpop.xlane.xlu0 %677
    %679 = vadd.xlane.f32.xlu0 %v664
    %v680 = vpop.xlane.xlu0 %679
    %681 = vadd.xlane.f32.xlu0 %v666
    %v682 = vpop.xlane.xlu0 %681
    %v683 = vrcp.pop %v668
    %v684 = vmul.f32 %v652, %v683
    %v685 = vrcp.pop %v670
    %v686 = vmul.f32 %v654, %v685
    %v687 = vrcp.pop %v672
    %v688 = vmul.f32 %v656, %v687
    %v689 = vrcp.pop %v674
    %v690 = vmul.f32 %v658, %v689
    %v691 = vrcp.pop %v676
    %v692 = vmul.f32 %v660, %v691
    %v693 = vrcp.pop %v678
    %v694 = vmul.f32 %v662, %v693
    %v695 = vrcp.pop %v680
    %v696 = vmul.f32 %v664, %v695
    %v697 = vrcp.pop %v682
    %v698 = vmul.f32 %v666, %v697
    %vm699 = vcmp.eq.s32.totalorder %v588, 0
    %v700 = vsel %vm699, %v606, 0.0
    %v701 = vsel %vm699, %v608, 0.0
    %v702 = vsel %vm699, %v610, 0.0
    %v703 = vsel %vm699, %v612, 0.0
    %v704 = vadd.f32 %v700, %v684
    %v705 = vadd.f32 %v701, %v686
    %v706 = vadd.f32 %v702, %v688
    %v707 = vadd.f32 %v703, %v690
    %v708 = vadd.f32 %v704, %v692
    %v709 = vadd.f32 %v705, %v694
    %v710 = vadd.f32 %v706, %v696
    %v711 = vadd.f32 %v707, %v698
    %712 = vrot.lane.b32.xlu0 %v480, 64
    %v713 = vpop.permute.xlu0 %712
    %714 = vrot.lane.b32.xlu0 %v481, 64
    %v715 = vpop.permute.xlu0 %714
    %716 = vrot.lane.b32.xlu0 %v482, 64
    %v717 = vpop.permute.xlu0 %716
    %718 = vrot.lane.b32.xlu0 %v483, 64
    %v719 = vpop.permute.xlu0 %718
    %v720 = vadd.f32 %v708, %v713
    %v721 = vadd.f32 %v709, %v715
    %v722 = vadd.f32 %v710, %v717
    %v723 = vadd.f32 %v711, %v719
    %724 = vst [vmem:[#allocation8] sm:$0xff] %v720
    %725 = vst [vmem:[#allocation8 + $0x8] sm:$0xff] %v721
    %726 = vst [vmem:[#allocation8 + $0x10] sm:$0xff] %v722
    %727 = vst [vmem:[#allocation8 + $0x18] sm:$0xff] %v723
    // Predicated region
    $region26: #{tpu_custom_call.1} parent=1 // pred_check
      _
    $region27: #{tpu_custom_call.1} parent=1 // pred_check_branch
      %729 = sbr.rel (0) target = $region29
    $region28: #{tpu_custom_call.1} parent=1 // pred_region
      %s731 = ssub.s32 512, 512
      %732 = vsyncadd [#allocation4], %s731
      %s733 = sshll.u32 [#allocation8], 4
      %s734 = int_to_ptr.vmem [resolvable:$true] %s733
      %739 = dma.vmem_to_hbm [thread:$0]  %s734, 512, %s3, [#allocation4], 128, 128, 8
    $region29: #{tpu_custom_call.1} parent=1 // pred_fallthru
      _
    // Predicated region
    $region30: #{tpu_custom_call.1} parent=1 // pred_check
      _
    $region31: #{tpu_custom_call.1} parent=1 // pred_check_branch
      %741 = sbr.rel (0) target = $region33
    $region32: #{tpu_custom_call.1} parent=1 // pred_region
      %742 = dma.done [#allocation4], 512
    $region33: #{tpu_custom_call.1} parent=1 // pred_fallthru
      _
    %743 = vsyncpa [#allocation3], 1
    %744 = vsyncpa [#allocation6], 1
    %745 = vsyncpa [#allocation4], 1

</llo_original>
